<compile_context>
chip_gen: v7x
topology: tpu7x:2x2x1
jax: 0.10.0
libtpu: 0.0.40
codegen_flags: <defaults>
</compile_context>

<pallas_src>
import functools

import jax
import jax.numpy as jnp
from jax import lax
from jax.experimental import pallas as pl
from jax.experimental.pallas import tpu as pltpu

# Model hyper-parameters (from the PyTorch script)
H_DIM = 128
R_DIM = 5
X_DIM = 6
Y_DIM = 1
Z_DIM = 1
IN_DIM = X_DIM + Z_DIM + R_DIM          # 12

# activation() is constructed with its DEFAULT boundary [-5.0, 5.0]
A_MIN, A_MAX = -5.0, 5.0

LANE = 128
SUBLANE = 8
HEAD_ROWS = 8                            # padded head rows (mu=0, sigma=1, rest zero)
HEAD_OUT = 2 * Y_DIM                     # rows actually written back (mu, sigma)


def _round_up(v, m):
    return ((v + m - 1) // m) * m


def _decoder_kernel(inp_ref,
                    w1_ref, b1_ref,
                    w2_ref, b2_ref,
                    w3_ref, b3_ref,
                    wh_ref, bh_ref,
                    out_ref,
                    *, compute_dtype):
    """One tile of rows; all weights fully resident in VMEM.

    inp_ref : (tm, IN_DIM) compute_dtype
    w1/w2/w3: matmul weights in compute_dtype, biases (1, H) f32
    wh_ref  : (HEAD_ROWS, H) compute_dtype -- row 0 = mu head, row 1 = sigma head
    bh_ref  : (HEAD_ROWS, 1) f32
    out_ref : (HEAD_OUT, tm) f32 -- row 0 = mu (clamped), row 1 = sigma
    """
    x = inp_ref[...]                                                      # (tm, 12)

    h = jnp.dot(x, w1_ref[...], preferred_element_type=jnp.float32) + b1_ref[...]
    h = jnp.maximum(h, 0.0)
    h = jnp.dot(h.astype(compute_dtype), w2_ref[...],
                preferred_element_type=jnp.float32) + b2_ref[...]
    h = jnp.maximum(h, 0.0)
    h = jnp.dot(h.astype(compute_dtype), w3_ref[...],
                preferred_element_type=jnp.float32) + b3_ref[...]
    h = jnp.maximum(h, 0.0)                                               # (tm, H) f32

    # Narrow transposed head: (HEAD_ROWS, H) . (tm, H)^T -> (HEAD_ROWS, tm).
    # (Same trans-B dimension_numbers as the canonical flash-attention q@k^T.)
    y = lax.dot_general(
        wh_ref[...], h.astype(compute_dtype),
        dimension_numbers=(((1,), (1,)), ((), ())),
        preferred_element_type=jnp.float32) + bh_ref[...]                 # (8, tm) f32

    mu = jnp.clip(y, A_MIN, A_MAX)            # constrain_output (elementwise clamp)
    sigma = 0.1 + 0.9 * jax.nn.softplus(y)    # f32 epilogue (v5e-safe, no bf16 EUP)
    row = lax.broadcasted_iota(jnp.int32, y.shape, 0)
    packed = jnp.where(row == 0, mu, sigma)   # row 0 = mu, row 1 = sigma
    out_ref[...] = packed[0:HEAD_OUT, :]      # lane-dense (2, tm) store


@functools.partial(jax.jit, static_argnames=("tm", "use_bf16"))
def decoder_forward(x, z, r, params, tm=2048, use_bf16=True):
    """
    x : (B, N, x_dim) f32,  z : (B, z_dim) f32,  r : (B, r_dim) f32
    Returns (mu, sigma), each (B, N, y_dim) f32.
    """
    B, N, _ = x.shape
    M = B * N

    # --- glue: broadcast z/r across points, concat, flatten (natural 12-wide) ---
    z_rep = jnp.broadcast_to(z[:, None, :], (B, N, Z_DIM))
    r_rep = jnp.broadcast_to(r[:, None, :], (B, N, R_DIM))
    inp = jnp.concatenate(
        [x.reshape(M, X_DIM), z_rep.reshape(M, Z_DIM), r_rep.reshape(M, R_DIM)],
        axis=1)                                                           # (M, 12)

    # Row tiling: multiples of 128 (lane-dense packed output), big tiles for real
    # workloads, capped at ceil(M/2) so v7x's two TensorCores both get a step.
    half = _round_up(-(-M // 2), LANE)
    tm_eff = max(LANE, min(_round_up(tm, LANE), half))
    M_pad = _round_up(M, tm_eff)
    inp_p = jnp.pad(inp, ((0, M_pad - M), (0, 0)))                        # (M_pad, 12)

    (w1, b1), (w2, b2), (w3, b3), (wmu, bmu), (wsig, bsig) = params

    # Fused narrow head: row 0 = mu, row 1 = sigma, remaining rows zero.
    wh = jnp.concatenate(
        [wmu.T, wsig.T,
         jnp.zeros((HEAD_ROWS - 2 * Y_DIM, H_DIM), jnp.float32)], axis=0)  # (8, H)
    bh = jnp.concatenate(
        [bmu, bsig, jnp.zeros((HEAD_ROWS - 2 * Y_DIM,), jnp.float32)]
    ).reshape(HEAD_ROWS, 1)                                                # (8, 1)

    compute_dtype = jnp.bfloat16 if use_bf16 else jnp.float32
    inp_p = inp_p.astype(compute_dtype)
    w1c = w1.astype(compute_dtype)
    w2c = w2.astype(compute_dtype)
    w3c = w3.astype(compute_dtype)
    whc = wh.astype(compute_dtype)
    b1r = b1.reshape(1, H_DIM).astype(jnp.float32)
    b2r = b2.reshape(1, H_DIM).astype(jnp.float32)
    b3r = b3.reshape(1, H_DIM).astype(jnp.float32)
    bhr = bh.astype(jnp.float32)

    grid = (M_pad // tm_eff,)
    row_in = pl.BlockSpec((tm_eff, IN_DIM), lambda i: (i, 0))
    out_spec = pl.BlockSpec((HEAD_OUT, tm_eff), lambda i: (0, i))
    full = lambda shp: pl.BlockSpec(shp, lambda i: (0, 0))

    in_itemsize = 2 if use_bf16 else 4
    weight_bytes = (in_itemsize * (IN_DIM * H_DIM + 2 * H_DIM * H_DIM
                                   + HEAD_ROWS * H_DIM)
                    + 4 * (3 * H_DIM + HEAD_ROWS))
    cost = pl.CostEstimate(
        flops=2 * M_pad * (IN_DIM * H_DIM + 2 * H_DIM * H_DIM + HEAD_ROWS * H_DIM),
        transcendentals=2 * M_pad * HEAD_ROWS,      # exp+log of softplus per head row
        bytes_accessed=(M_pad * IN_DIM * in_itemsize
                        + HEAD_OUT * M_pad * 4
                        + weight_bytes),
    )

    out = pl.pallas_call(
        functools.partial(_decoder_kernel, compute_dtype=compute_dtype),
        out_shape=jax.ShapeDtypeStruct((HEAD_OUT, M_pad), jnp.float32),
        grid_spec=pltpu.PrefetchScalarGridSpec(
            num_scalar_prefetch=0,
            grid=grid,
            in_specs=[row_in,
                      full((IN_DIM, H_DIM)), full((1, H_DIM)),
                      full((H_DIM, H_DIM)), full((1, H_DIM)),
                      full((H_DIM, H_DIM)), full((1, H_DIM)),
                      full((HEAD_ROWS, H_DIM)), full((HEAD_ROWS, 1))],
            out_specs=out_spec,
        ),
        compiler_params=pltpu.CompilerParams(
            dimension_semantics=("parallel",)),
        cost_estimate=cost,
    )(inp_p,
      w1c, b1r, w2c, b2r, w3c, b3r, whc, bhr)

    mu = out[0, :M].reshape(B, N, Y_DIM)
    sigma = out[1, :M].reshape(B, N, Y_DIM)
    return mu, sigma


def init_params(key):
    """Deterministic init mimicking nn.Linear: U(-1/sqrt(fan_in), 1/sqrt(fan_in)).
    Weights stored as (in_dim, out_dim) for right-multiplication."""
    def linear(key, fan_in, fan_out):
        kw, kb = jax.random.split(key)
        bound = 1.0 / jnp.sqrt(fan_in)
        w = jax.random.uniform(kw, (fan_in, fan_out), jnp.float32, -bound, bound)
        b = jax.random.uniform(kb, (fan_out,), jnp.float32, -bound, bound)
        return w, b

    keys = jax.random.split(key, 5)
    return (linear(keys[0], IN_DIM, H_DIM),
            linear(keys[1], H_DIM, H_DIM),
            linear(keys[2], H_DIM, H_DIM),
            linear(keys[3], H_DIM, Y_DIM),
            linear(keys[4], H_DIM, Y_DIM))


def _reference(x, z, r, params):
    """Plain-JAX reference of the PyTorch forward."""
    B, N, _ = x.shape
    z_rep = jnp.broadcast_to(z[:, None, :], (B, N, Z_DIM))
    r_rep = jnp.broadcast_to(r[:, None, :], (B, N, R_DIM))
    inp = jnp.concatenate([x, z_rep, r_rep], axis=-1).reshape(B * N, -1)
    (w1, b1), (w2, b2), (w3, b3), (wmu, bmu), (wsig, bsig) = params
    h = jax.nn.relu(inp @ w1 + b1)
    h = jax.nn.relu(h @ w2 + b2)
    h = jax.nn.relu(h @ w3 + b3)
    mu = jnp.clip(h @ wmu + bmu, A_MIN, A_MAX).reshape(B, N, Y_DIM)
    sigma = (0.1 + 0.9 * jax.nn.softplus(h @ wsig + bsig)).reshape(B, N, Y_DIM)
    return mu, sigma


if __name__ == "__main__":
    key = jax.random.PRNGKey(0)
    kp, kx, kz, kr = jax.random.split(key, 4)
    params = init_params(kp)

    # --- small case (matches the module's shapes) ---
    B, N = 2, 8
    x = jax.random.normal(kx, (B, N, X_DIM), jnp.float32)
    z = jax.random.normal(kz, (B, Z_DIM), jnp.float32)
    r = jax.random.normal(kr, (B, R_DIM), jnp.float32)
    mu_ref, sigma_ref = _reference(x, z, r, params)

    # exact-f32 path: tight tolerance
    mu, sigma = decoder_forward(x, z, r, params, use_bf16=False)
    jax.block_until_ready((mu, sigma))
    assert mu.shape == (B, N, Y_DIM) and sigma.shape == (B, N, Y_DIM)
    assert jnp.allclose(mu, mu_ref, atol=1e-4, rtol=1e-4)
    assert jnp.allclose(sigma, sigma_ref, atol=1e-4, rtol=1e-4)

    # default bf16-MXU path: loose tolerance (includes input quantization to bf16)
    mu_b, sigma_b = decoder_forward(x, z, r, params)
    jax.block_until_ready((mu_b, sigma_b))
    assert jnp.allclose(mu_b, mu_ref, atol=5e-2, rtol=5e-2)
    assert jnp.allclose(sigma_b, sigma_ref, atol=5e-2, rtol=5e-2)

    # --- larger case: exercises row padding + multi-step grid (>=2 tiles) ---
    B2, N2 = 4, 300
    x2 = jax.random.normal(kx, (B2, N2, X_DIM), jnp.float32)
    z2 = jax.random.normal(kz, (B2, Z_DIM), jnp.float32)
    r2 = jax.random.normal(kr, (B2, R_DIM), jnp.float32)
    mu2_ref, sig2_ref = _reference(x2, z2, r2, params)

    mu2, sig2 = decoder_forward(x2, z2, r2, params, use_bf16=False)
    jax.block_until_ready((mu2, sig2))
    assert jnp.allclose(mu2, mu2_ref, atol=1e-4, rtol=1e-4)
    assert jnp.allclose(sig2, sig2_ref, atol=1e-4, rtol=1e-4)

    mu3, sig3 = decoder_forward(x2, z2, r2, params)   # bf16 default
    jax.block_until_ready((mu3, sig3))
    assert jnp.allclose(mu3, mu2_ref, atol=5e-2, rtol=5e-2)
    assert jnp.allclose(sig3, sig2_ref, atol=5e-2, rtol=5e-2)

    print("KERNEL_OK")
</pallas_src>

<mosaic_0001>
module attributes {stable_mosaic.version = 11 : i64} {
  func.func @_decoder_kernel(%arg0: i32, %arg1: memref<128x12xf32, #tpu.memory_space<vmem>>, %arg2: memref<12x128xf32, #tpu.memory_space<vmem>>, %arg3: memref<1x128xf32, #tpu.memory_space<vmem>>, %arg4: memref<128x128xf32, #tpu.memory_space<vmem>>, %arg5: memref<1x128xf32, #tpu.memory_space<vmem>>, %arg6: memref<128x128xf32, #tpu.memory_space<vmem>>, %arg7: memref<1x128xf32, #tpu.memory_space<vmem>>, %arg8: memref<8x128xf32, #tpu.memory_space<vmem>>, %arg9: memref<8x1xf32, #tpu.memory_space<vmem>>, %arg10: memref<2x128xf32, #tpu.memory_space<vmem>>) attributes {dimension_semantics = [#tpu.dimension_semantics<parallel>], iteration_bounds = array<i64: 1>, scalar_prefetch = 0 : i64, scratch_operands = 0 : i64, tpu.core_type = #tpu.core_type<tc>, window_params = [{transform_indices = @transform_0, window_bounds = array<i64: 128, 12>}, {pipeline_mode = #tpu.pipeline_mode<synchronous>, transform_indices = @transform_1, window_bounds = array<i64: 12, 128>}, {pipeline_mode = #tpu.pipeline_mode<synchronous>, transform_indices = @transform_2, window_bounds = array<i64: 1, 128>}, {pipeline_mode = #tpu.pipeline_mode<synchronous>, transform_indices = @transform_3, window_bounds = array<i64: 128, 128>}, {pipeline_mode = #tpu.pipeline_mode<synchronous>, transform_indices = @transform_4, window_bounds = array<i64: 1, 128>}, {pipeline_mode = #tpu.pipeline_mode<synchronous>, transform_indices = @transform_5, window_bounds = array<i64: 128, 128>}, {pipeline_mode = #tpu.pipeline_mode<synchronous>, transform_indices = @transform_6, window_bounds = array<i64: 1, 128>}, {pipeline_mode = #tpu.pipeline_mode<synchronous>, transform_indices = @transform_7, window_bounds = array<i64: 8, 128>}, {pipeline_mode = #tpu.pipeline_mode<synchronous>, transform_indices = @transform_8, window_bounds = array<i64: 8, 1>}, {transform_indices = @transform_9, window_bounds = array<i64: 2, 128>}]} {
    %c0 = arith.constant 0 : index
    %c0_0 = arith.constant 0 : index
    %0 = vector.load %arg1[%c0, %c0_0] : memref<128x12xf32, #tpu.memory_space<vmem>>, vector<128x12xf32>
    %c0_1 = arith.constant 0 : index
    %c0_2 = arith.constant 0 : index
    %1 = vector.load %arg2[%c0_1, %c0_2] : memref<12x128xf32, #tpu.memory_space<vmem>>, vector<12x128xf32>
    %cst = arith.constant dense<0.000000e+00> : vector<128x128xf32>
    %2 = tpu.matmul %0, %1, %cst {dimension_numbers = #tpu.dot_dimension_numbers<[1], [0], [0], [1], [0, 0, 1, 1], [], []>} : vector<128x12xf32>, vector<12x128xf32>, vector<128x128xf32> -> vector<128x128xf32>
    %c0_3 = arith.constant 0 : index
    %c0_4 = arith.constant 0 : index
    %3 = vector.load %arg3[%c0_3, %c0_4] : memref<1x128xf32, #tpu.memory_space<vmem>>, vector<1x128xf32>
    %4 = vector.broadcast %3 : vector<1x128xf32> to vector<128x128xf32>
    %5 = arith.addf %2, %4 : vector<128x128xf32>
    %cst_5 = arith.constant 0.000000e+00 : f32
    %6 = vector.broadcast %cst_5 : f32 to vector<128x128xf32>
    %7 = arith.maximumf %5, %6 : vector<128x128xf32>
    %c0_6 = arith.constant 0 : index
    %c0_7 = arith.constant 0 : index
    %8 = vector.load %arg4[%c0_6, %c0_7] : memref<128x128xf32, #tpu.memory_space<vmem>>, vector<128x128xf32>
    %cst_8 = arith.constant dense<0.000000e+00> : vector<128x128xf32>
    %9 = tpu.matmul %7, %8, %cst_8 {dimension_numbers = #tpu.dot_dimension_numbers<[1], [0], [0], [1], [0, 0, 1, 1], [], []>} : vector<128x128xf32>, vector<128x128xf32>, vector<128x128xf32> -> vector<128x128xf32>
    %c0_9 = arith.constant 0 : index
    %c0_10 = arith.constant 0 : index
    %10 = vector.load %arg5[%c0_9, %c0_10] : memref<1x128xf32, #tpu.memory_space<vmem>>, vector<1x128xf32>
    %11 = vector.broadcast %10 : vector<1x128xf32> to vector<128x128xf32>
    %12 = arith.addf %9, %11 : vector<128x128xf32>
    %cst_11 = arith.constant 0.000000e+00 : f32
    %13 = vector.broadcast %cst_11 : f32 to vector<128x128xf32>
    %14 = arith.maximumf %12, %13 : vector<128x128xf32>
    %c0_12 = arith.constant 0 : index
    %c0_13 = arith.constant 0 : index
    %15 = vector.load %arg6[%c0_12, %c0_13] : memref<128x128xf32, #tpu.memory_space<vmem>>, vector<128x128xf32>
    %cst_14 = arith.constant dense<0.000000e+00> : vector<128x128xf32>
    %16 = tpu.matmul %14, %15, %cst_14 {dimension_numbers = #tpu.dot_dimension_numbers<[1], [0], [0], [1], [0, 0, 1, 1], [], []>} : vector<128x128xf32>, vector<128x128xf32>, vector<128x128xf32> -> vector<128x128xf32>
    %c0_15 = arith.constant 0 : index
    %c0_16 = arith.constant 0 : index
    %17 = vector.load %arg7[%c0_15, %c0_16] : memref<1x128xf32, #tpu.memory_space<vmem>>, vector<1x128xf32>
    %18 = vector.broadcast %17 : vector<1x128xf32> to vector<128x128xf32>
    %19 = arith.addf %16, %18 : vector<128x128xf32>
    %cst_17 = arith.constant 0.000000e+00 : f32
    %20 = vector.broadcast %cst_17 : f32 to vector<128x128xf32>
    %21 = arith.maximumf %19, %20 : vector<128x128xf32>
    %c0_18 = arith.constant 0 : index
    %c0_19 = arith.constant 0 : index
    %22 = vector.load %arg8[%c0_18, %c0_19] : memref<8x128xf32, #tpu.memory_space<vmem>>, vector<8x128xf32>
    %cst_20 = arith.constant dense<0.000000e+00> : vector<8x128xf32>
    %23 = tpu.matmul %22, %21, %cst_20 {dimension_numbers = #tpu.dot_dimension_numbers<[1], [1], [0], [0], [0, 0, 1, 0], [], []>} : vector<8x128xf32>, vector<128x128xf32>, vector<8x128xf32> -> vector<8x128xf32>
    %c0_21 = arith.constant 0 : index
    %c0_22 = arith.constant 0 : index
    %24 = vector.load %arg9[%c0_21, %c0_22] : memref<8x1xf32, #tpu.memory_space<vmem>>, vector<8x1xf32>
    %25 = vector.broadcast %24 : vector<8x1xf32> to vector<8x128xf32>
    %26 = arith.addf %23, %25 : vector<8x128xf32>
    %cst_23 = arith.constant -5.000000e+00 : f32
    %cst_24 = arith.constant 5.000000e+00 : f32
    %27 = vector.broadcast %cst_23 : f32 to vector<8x128xf32>
    %28 = arith.maximumf %27, %26 : vector<8x128xf32>
    %29 = vector.broadcast %cst_24 : f32 to vector<8x128xf32>
    %30 = arith.minimumf %29, %28 : vector<8x128xf32>
    %cst_25 = arith.constant 0.000000e+00 : f32
    %31 = vector.broadcast %cst_25 : f32 to vector<8x128xf32>
    %32 = arith.maximumf %26, %31 : vector<8x128xf32>
    %33 = vector.broadcast %cst_25 : f32 to vector<8x128xf32>
    %34 = arith.subf %26, %33 : vector<8x128xf32>
    %35 = arith.cmpf one, %34, %34 : vector<8x128xf32>
    %36 = vector.broadcast %cst_25 : f32 to vector<8x128xf32>
    %37 = arith.addf %26, %36 : vector<8x128xf32>
    %38 = math.absf %34 : vector<8x128xf32>
    %cst_26 = arith.constant 0.000000e+00 : f32
    %39 = vector.broadcast %cst_26 : f32 to vector<8x128xf32>
    %40 = arith.subf %39, %38 : vector<8x128xf32>
    %41 = math.exp %40 : vector<8x128xf32>
    %42 = math.log1p %41 : vector<8x128xf32>
    %43 = arith.addf %32, %42 : vector<8x128xf32>
    %44 = arith.select %35, %37, %43 : vector<8x128xi1>, vector<8x128xf32>
    %cst_27 = arith.constant 0.899999976 : f32
    %45 = vector.broadcast %cst_27 : f32 to vector<8x128xf32>
    %46 = arith.mulf %45, %44 : vector<8x128xf32>
    %cst_28 = arith.constant 1.000000e-01 : f32
    %47 = vector.broadcast %cst_28 : f32 to vector<8x128xf32>
    %48 = arith.addf %47, %46 : vector<8x128xf32>
    %49 = tpu.iota {dimensions = array<i32: 0>} : vector<8x128xi32>
    %c0_i32 = arith.constant 0 : i32
    %50 = vector.broadcast %c0_i32 : i32 to vector<8x128xi32>
    %51 = arith.cmpi eq, %49, %50 : vector<8x128xi32>
    %52 = arith.select %51, %30, %48 : vector<8x128xi1>, vector<8x128xf32>
    %53 = vector.extract_strided_slice %52 {offsets = [0, 0], sizes = [2, 128], strides = [1, 1]} : vector<8x128xf32> to vector<2x128xf32>
    %c0_29 = arith.constant 0 : index
    %c0_30 = arith.constant 0 : index
    %54 = vector.load %arg10[%c0_29, %c0_30] : memref<2x128xf32, #tpu.memory_space<vmem>>, vector<2x128xf32>
    tpu.vector_store %arg10[%c0_29, %c0_30], %53 {strides = array<i32>} : memref<2x128xf32, #tpu.memory_space<vmem>>, vector<2x128xf32>,
    return
  }
  func.func @transform_0(%arg0: i32) -> (i32, i32) {
    %c0_i32 = arith.constant 0 : i32
    %c0_i32_0 = arith.constant 0 : i32
    return %arg0, %c0_i32 : i32, i32
  }
  func.func @transform_1(%arg0: i32) -> (i32, i32) {
    %c0_i32 = arith.constant 0 : i32
    %c0_i32_0 = arith.constant 0 : i32
    %c0_i32_1 = arith.constant 0 : i32
    return %c0_i32, %c0_i32_0 : i32, i32
  }
  func.func @transform_2(%arg0: i32) -> (i32, i32) {
    %c0_i32 = arith.constant 0 : i32
    %c0_i32_0 = arith.constant 0 : i32
    %c0_i32_1 = arith.constant 0 : i32
    return %c0_i32, %c0_i32_0 : i32, i32
  }
  func.func @transform_3(%arg0: i32) -> (i32, i32) {
    %c0_i32 = arith.constant 0 : i32
    %c0_i32_0 = arith.constant 0 : i32
    %c0_i32_1 = arith.constant 0 : i32
    return %c0_i32, %c0_i32_0 : i32, i32
  }
  func.func @transform_4(%arg0: i32) -> (i32, i32) {
    %c0_i32 = arith.constant 0 : i32
    %c0_i32_0 = arith.constant 0 : i32
    %c0_i32_1 = arith.constant 0 : i32
    return %c0_i32, %c0_i32_0 : i32, i32
  }
  func.func @transform_5(%arg0: i32) -> (i32, i32) {
    %c0_i32 = arith.constant 0 : i32
    %c0_i32_0 = arith.constant 0 : i32
    %c0_i32_1 = arith.constant 0 : i32
    return %c0_i32, %c0_i32_0 : i32, i32
  }
  func.func @transform_6(%arg0: i32) -> (i32, i32) {
    %c0_i32 = arith.constant 0 : i32
    %c0_i32_0 = arith.constant 0 : i32
    %c0_i32_1 = arith.constant 0 : i32
    return %c0_i32, %c0_i32_0 : i32, i32
  }
  func.func @transform_7(%arg0: i32) -> (i32, i32) {
    %c0_i32 = arith.constant 0 : i32
    %c0_i32_0 = arith.constant 0 : i32
    %c0_i32_1 = arith.constant 0 : i32
    return %c0_i32, %c0_i32_0 : i32, i32
  }
  func.func @transform_8(%arg0: i32) -> (i32, i32) {
    %c0_i32 = arith.constant 0 : i32
    %c0_i32_0 = arith.constant 0 : i32
    %c0_i32_1 = arith.constant 0 : i32
    return %c0_i32, %c0_i32_0 : i32, i32
  }
  func.func @transform_9(%arg0: i32) -> (i32, i32) {
    %c0_i32 = arith.constant 0 : i32
    %c0_i32_0 = arith.constant 0 : i32
    return %c0_i32, %arg0 : i32, i32
  }
}

</mosaic_0001>

<llo_original>
// kernel: squeeze.2
$region0: #{squeeze.2}
  %s0 = inlined_call_operand.vmem [shape: f32[16], index: 0, kind: input, shape index: {}]
  %s1 = inlined_call_operand.hbm [shape: f32[2,8,1], index: 1, kind: output, shape index: {}]
  $region1: #{squeeze.2} parent=0
    #allocation0 [shape = 'u8[1024]{0}', space=vmem, size = 0x400, scoped, tag = 'operand span for operand 1']
    #allocation1 [shape = 's32[1]{0}', space=sflag, size = 0x4, scoped, tag = 'scoped memory for squeeze.2']
    #allocation2 [shape = 'u8[4096]{0}', space=vmem, size = 0x1000, scoped, tag = 'scoped mem for output reshape']
    #allocation3 [shape = 'u8[4096]{0}', space=vmem, size = 0x1000, scoped, tag = 'scoped mem for input reshape']
    %2 = vsyncpa [#allocation1], 0
    %s4 = sshllo.u32 0, 1
    %v5 = vld [vmem:[%s0] sm:%s4]
    %6 = vst [vmem:[#allocation3] sm:%s4] %v5
    %v7 = vld [vmem:[#allocation3] sm:$0x1]
    %vm8 = vcmask 64512
    %9 = vst.msk [vmem:[#allocation2] sm:$0x1] %vm8, %v7
    %v10 = vld [vmem:[#allocation3] sm:$0x1]
    %11 = vrot.lane.b32.xlu0 %v10, 120
    %v12 = vpop.permute.xlu0 %11
    %vm13 = vcmask 64512
    %s14 = scalar_lea.vmem [#allocation2], 1
    %15 = vst.msk [vmem:[%s14] sm:$0x1] %vm13, %v12
    %s17 = sshllo.u32 0, 2
    %v19 = vld [vmem:[#allocation2] sm:%s17]
    %s20 = sshllo.u32 0, 2
    %21 = vst [vmem:[#allocation0] sm:%s20] %v19
    %s23 = ssub.s32 32, 32
    %24 = vsyncadd [#allocation1], %s23
    %s26 = sshll.u32 [#allocation0], 4
    %s27 = int_to_ptr.vmem [resolvable:$true] %s26
    %29 = dma.vmem_to_hbm [thread:$0]  %s27, 32, %s1, [#allocation1]
    %30 = dma.done [#allocation1], 32
    %31 = vsyncpa [#allocation1], 1

// kernel: decoder_forward.1
$region0: #{decoder_forward.1}
  #allocation0 [shape = 'u32[]', space=smem, size = 0x4, offset = 0x4, fixed_abs, tag = 'smem constant byte address 0x4 - core index']
  #allocation1 [shape = 'u32[144,128]{1,0:T(1,128)}', space=vmem, size = 0x12000, scoped, tag = 'internal scratch']
  %s0 = inlined_call_operand.vmem [shape: f32[128,12], index: 0, kind: input, shape index: {}]
  %s1 = inlined_call_operand.vmem [shape: f32[12,128], index: 1, kind: input, shape index: {}]
  %s2 = inlined_call_operand.vmem [shape: f32[1,128], index: 2, kind: input, shape index: {}]
  %s3 = inlined_call_operand.vmem [shape: f32[128,128], index: 3, kind: input, shape index: {}]
  %s4 = inlined_call_operand.vmem [shape: f32[1,128], index: 4, kind: input, shape index: {}]
  %s5 = inlined_call_operand.vmem [shape: f32[128,128], index: 5, kind: input, shape index: {}]
  %s6 = inlined_call_operand.vmem [shape: f32[1,128], index: 6, kind: input, shape index: {}]
  %s7 = inlined_call_operand.vmem [shape: f32[8,128], index: 7, kind: input, shape index: {}]
  %s8 = inlined_call_operand.vmem [shape: f32[8,1], index: 8, kind: input, shape index: {}]
  %s9 = inlined_call_operand.vmem [shape: f32[2,128], index: 9, kind: output, shape index: {}]
  %s10 = sld [smem:[#allocation0]]
  $region46: #{decoder_forward.1} parent=0
    _
  %s12 = ssub.s32 1, %s10
  %s13 = scalar_select 0, %s12, %s10
  // Predicated region
  $region2: #{decoder_forward.1} parent=0 // pred_check
    _
  $region3: #{decoder_forward.1} parent=0 // pred_check_branch
    %15 = sbr.rel (0) target = $region5
  $region4: #{decoder_forward.1} parent=0 // pred_region
    _
  $region5: #{decoder_forward.1} parent=0 // pred_fallthru
    _
  // Predicated region
  $region6: #{decoder_forward.1} parent=0 // pred_check
    _
  $region7: #{decoder_forward.1} parent=0 // pred_check_branch
    %17 = sbr.rel (0) target = $region9
  $region8: #{decoder_forward.1} parent=0 // pred_region
    _
  $region9: #{decoder_forward.1} parent=0 // pred_fallthru
    _
  // Predicated region
  $region10: #{decoder_forward.1} parent=0 // pred_check
    _
  $region11: #{decoder_forward.1} parent=0 // pred_check_branch
    %19 = sbr.rel (0) target = $region13
  $region12: #{decoder_forward.1} parent=0 // pred_region
    _
  $region13: #{decoder_forward.1} parent=0 // pred_fallthru
    _
  // Predicated region
  $region14: #{decoder_forward.1} parent=0 // pred_check
    _
  $region15: #{decoder_forward.1} parent=0 // pred_check_branch
    %21 = sbr.rel (0) target = $region17
  $region16: #{decoder_forward.1} parent=0 // pred_region
    _
  $region17: #{decoder_forward.1} parent=0 // pred_fallthru
    _
  // Predicated region
  $region18: #{decoder_forward.1} parent=0 // pred_check
    _
  $region19: #{decoder_forward.1} parent=0 // pred_check_branch
    %23 = sbr.rel (0) target = $region21
  $region20: #{decoder_forward.1} parent=0 // pred_region
    _
  $region21: #{decoder_forward.1} parent=0 // pred_fallthru
    _
  // Predicated region
  $region22: #{decoder_forward.1} parent=0 // pred_check
    _
  $region23: #{decoder_forward.1} parent=0 // pred_check_branch
    %25 = sbr.rel (0) target = $region25
  $region24: #{decoder_forward.1} parent=0 // pred_region
    _
  $region25: #{decoder_forward.1} parent=0 // pred_fallthru
    _
  // Predicated region
  $region26: #{decoder_forward.1} parent=0 // pred_check
    _
  $region27: #{decoder_forward.1} parent=0 // pred_check_branch
    %27 = sbr.rel (0) target = $region29
  $region28: #{decoder_forward.1} parent=0 // pred_region
    _
  $region29: #{decoder_forward.1} parent=0 // pred_fallthru
    _
  // Predicated region
  $region30: #{decoder_forward.1} parent=0 // pred_check
    _
  $region31: #{decoder_forward.1} parent=0 // pred_check_branch
    %29 = sbr.rel (0) target = $region33
  $region32: #{decoder_forward.1} parent=0 // pred_region
    _
  $region33: #{decoder_forward.1} parent=0 // pred_fallthru
    _
  // Predicated region
  $region34: #{decoder_forward.1} parent=0 // pred_check
    _
  $region35: #{decoder_forward.1} parent=0 // pred_check_branch
    %31 = sbr.rel (0) target = $region37
  $region36: #{decoder_forward.1} parent=0 // pred_region
    _
  $region37: #{decoder_forward.1} parent=0 // pred_fallthru
    _
  %v32 = vld [vmem:[%s0] sm:$0xff]
  %v33 = vld [vmem:[%s0 + $0x8] sm:$0xff]
  %v34 = vld [vmem:[%s0 + $0x10] sm:$0xff]
  %v35 = vld [vmem:[%s0 + $0x18] sm:$0xff]
  %v36 = vld [vmem:[%s0 + $0x20] sm:$0xff]
  %v37 = vld [vmem:[%s0 + $0x28] sm:$0xff]
  %v38 = vld [vmem:[%s0 + $0x30] sm:$0xff]
  %v39 = vld [vmem:[%s0 + $0x38] sm:$0xff]
  %v40 = vld [vmem:[%s0 + $0x40] sm:$0xff]
  %v41 = vld [vmem:[%s0 + $0x48] sm:$0xff]
  %v42 = vld [vmem:[%s0 + $0x50] sm:$0xff]
  %v43 = vld [vmem:[%s0 + $0x58] sm:$0xff]
  %v44 = vld [vmem:[%s0 + $0x60] sm:$0xff]
  %v45 = vld [vmem:[%s0 + $0x68] sm:$0xff]
  %v46 = vld [vmem:[%s0 + $0x70] sm:$0xff]
  %v47 = vld [vmem:[%s0 + $0x78] sm:$0xff]
  %v48 = vld [vmem:[%s1] sm:$0xff]
  %v49 = vld [vmem:[%s1 + $0x8] sm:$0xf]
  %v50 = vld [vmem:[%s2] sm:$0x1]
  %v52 = vlaneseq
  %v53 = vshrl.u32 %v52, 7
  %v54 = vsub.s32 0, %v53
  %v55 = vrot.slane %v50, %v54
  %vm57 = vcmask 97280
  %v59 = vsel %vm57, %v32, 0
  %v62 = vsel %vm57, %v33, 0
  %v65 = vsel %vm57, %v34, 0
  %v68 = vsel %vm57, %v35, 0
  %v71 = vsel %vm57, %v36, 0
  %v74 = vsel %vm57, %v37, 0
  %v77 = vsel %vm57, %v38, 0
  %v80 = vsel %vm57, %v39, 0
  %v83 = vsel %vm57, %v40, 0
  %v86 = vsel %vm57, %v41, 0
  %v89 = vsel %vm57, %v42, 0
  %v92 = vsel %vm57, %v43, 0
  %v95 = vsel %vm57, %v44, 0
  %v98 = vsel %vm57, %v45, 0
  %v101 = vsel %vm57, %v46, 0
  %v104 = vsel %vm57, %v47, 0
  %vm106 = vcmask 1043456
  %v108 = vsel %vm106, %v49, 0
  %110 = vmatprep.subr.mxu0 0.0
  %111 = vmatpush1.msra.mxu0 %v48
  %112 = vmatprep.subr.mxu0 0.0
  %113 = vmatpush1.msra.mxu0 %v108
  %114 = vmatprep.subr.mxu0 0.0
  %115 = vmatpush1.msra.mxu0 0.0
  %116 = vmatprep.subr.mxu0 0.0
  %117 = vmatpush1.msra.mxu0 0.0
  %118 = vmatprep.subr.mxu0 0.0
  %119 = vmatpush1.msra.mxu0 0.0
  %120 = vmatprep.subr.mxu0 0.0
  %121 = vmatpush1.msra.mxu0 0.0
  %122 = vmatprep.subr.mxu0 0.0
  %123 = vmatpush1.msra.mxu0 0.0
  %124 = vmatprep.subr.mxu0 0.0
  %125 = vmatpush1.msra.mxu0 0.0
  %126 = vmatprep.subr.mxu0 0.0
  %127 = vmatpush1.msra.mxu0 0.0
  %128 = vmatprep.subr.mxu0 0.0
  %129 = vmatpush1.msra.mxu0 0.0
  %130 = vmatprep.subr.mxu0 0.0
  %131 = vmatpush1.msra.mxu0 0.0
  %132 = vmatprep.subr.mxu0 0.0
  %133 = vmatpush1.msra.mxu0 0.0
  %134 = vmatprep.subr.mxu0 0.0
  %135 = vmatpush1.msra.mxu0 0.0
  %136 = vmatprep.subr.mxu0 0.0
  %137 = vmatpush1.msra.mxu0 0.0
  %138 = vmatprep.subr.mxu0 0.0
  %139 = vmatpush1.msra.mxu0 0.0
  %140 = vmatprep.subr.mxu0 0.0
  %141 = vmatpush1.msra.mxu0 0.0
  %142 = vmatprep.subr.mxu0 0.0
  %143 = vmatpush1.msra.mxu0 0.0
  %144 = vmatprep.subr.mxu0 0.0
  %145 = vmatpush1.msra.mxu0 0.0
  %146 = vmatprep.subr.mxu0 0.0
  %147 = vmatpush1.msra.mxu0 0.0
  %148 = vmatprep.subr.mxu0 0.0
  %149 = vmatpush1.msra.mxu0 0.0
  %150 = vmatprep.subr.mxu0 0.0
  %151 = vmatpush1.msra.mxu0 0.0
  %152 = vmatprep.subr.mxu0 0.0
  %153 = vmatpush1.msra.mxu0 0.0
  %154 = vmatprep.subr.mxu0 0.0
  %155 = vmatpush1.msra.mxu0 0.0
  %156 = vmatprep.subr.mxu0 0.0
  %157 = vmatpush1.msra.mxu0 0.0
  %158 = vmatprep.subr.mxu0 0.0
  %159 = vmatpush1.msra.mxu0 0.0
  %160 = vmatprep.subr.mxu0 0.0
  %161 = vmatpush1.msra.mxu0 0.0
  %162 = vmatprep.subr.mxu0 0.0
  %163 = vmatpush1.msra.mxu0 0.0
  %164 = vmatprep.subr.mxu0 0.0
  %165 = vmatpush1.msra.mxu0 0.0
  %166 = vmatprep.subr.mxu0 0.0
  %167 = vmatpush1.msra.mxu0 0.0
  %168 = vmatprep.subr.mxu0 0.0
  %169 = vmatpush1.msra.mxu0 0.0
  %170 = vmatprep.subr.mxu0 0.0
  %171 = vmatpush1.msra.mxu0 0.0
  %172 = vmatprep.subr.mxu0 0.0
  %173 = vmatpush1.msra.mxu0 0.0
  %174 = vmatprep.mubr.f32.mxu0 0.0
  %175 = vmatmul.mubr.f32.gmra.mrb[0].mxu0 %v59
  %v176 = vpop.f32.mrb[0].mxu0
  %v177 = vadd.f32 %v55, %v176
  %v178 = vpop.f32.mrb[0].mxu0
  %179 = vmatprep.mubr.f32.mxu0 0.0
  %180 = vmatmul.mubr.f32.gmra.mrb[0].mxu0 %v62
  %v181 = vpop.f32.mrb[0].mxu0
  %v182 = vadd.f32 %v55, %v181
  %v183 = vpop.f32.mrb[0].mxu0
  %184 = vmatprep.mubr.f32.mxu0 0.0
  %185 = vmatmul.mubr.f32.gmra.mrb[0].mxu0 %v65
  %v186 = vpop.f32.mrb[0].mxu0
  %v187 = vadd.f32 %v55, %v186
  %v188 = vpop.f32.mrb[0].mxu0
  %189 = vmatprep.mubr.f32.mxu0 0.0
  %190 = vmatmul.mubr.f32.gmra.mrb[0].mxu0 %v68
  %v191 = vpop.f32.mrb[0].mxu0
  %v192 = vadd.f32 %v55, %v191
  %v193 = vpop.f32.mrb[0].mxu0
  %194 = vmatprep.mubr.f32.mxu0 0.0
  %195 = vmatmul.mubr.f32.gmra.mrb[0].mxu0 %v71
  %v196 = vpop.f32.mrb[0].mxu0
  %v197 = vadd.f32 %v55, %v196
  %v198 = vpop.f32.mrb[0].mxu0
  %199 = vmatprep.mubr.f32.mxu0 0.0
  %200 = vmatmul.mubr.f32.gmra.mrb[0].mxu0 %v74
  %v201 = vpop.f32.mrb[0].mxu0
  %v202 = vadd.f32 %v55, %v201
  %v203 = vpop.f32.mrb[0].mxu0
  %204 = vmatprep.mubr.f32.mxu0 0.0
  %205 = vmatmul.mubr.f32.gmra.mrb[0].mxu0 %v77
  %v206 = vpop.f32.mrb[0].mxu0
  %v207 = vadd.f32 %v55, %v206
  %v208 = vpop.f32.mrb[0].mxu0
  %209 = vmatprep.mubr.f32.mxu0 0.0
  %210 = vmatmul.mubr.f32.gmra.mrb[0].mxu0 %v80
  %v211 = vpop.f32.mrb[0].mxu0
  %v212 = vadd.f32 %v55, %v211
  %v213 = vpop.f32.mrb[0].mxu0
  %214 = vmatprep.mubr.f32.mxu0 0.0
  %215 = vmatmul.mubr.f32.gmra.mrb[0].mxu0 %v83
  %v216 = vpop.f32.mrb[0].mxu0
  %v217 = vadd.f32 %v55, %v216
  %v218 = vpop.f32.mrb[0].mxu0
  %219 = vmatprep.mubr.f32.mxu0 0.0
  %220 = vmatmul.mubr.f32.gmra.mrb[0].mxu0 %v86
  %v221 = vpop.f32.mrb[0].mxu0
  %v222 = vadd.f32 %v55, %v221
  %v223 = vpop.f32.mrb[0].mxu0
  %224 = vmatprep.mubr.f32.mxu0 0.0
  %225 = vmatmul.mubr.f32.gmra.mrb[0].mxu0 %v89
  %v226 = vpop.f32.mrb[0].mxu0
  %v227 = vadd.f32 %v55, %v226
  %v228 = vpop.f32.mrb[0].mxu0
  %229 = vmatprep.mubr.f32.mxu0 0.0
  %230 = vmatmul.mubr.f32.gmra.mrb[0].mxu0 %v92
  %v231 = vpop.f32.mrb[0].mxu0
  %v232 = vadd.f32 %v55, %v231
  %v233 = vpop.f32.mrb[0].mxu0
  %234 = vmatprep.mubr.f32.mxu0 0.0
  %235 = vmatmul.mubr.f32.gmra.mrb[0].mxu0 %v95
  %v236 = vpop.f32.mrb[0].mxu0
  %v237 = vadd.f32 %v55, %v236
  %v238 = vpop.f32.mrb[0].mxu0
  %239 = vmatprep.mubr.f32.mxu0 0.0
  %240 = vmatmul.mubr.f32.gmra.mrb[0].mxu0 %v98
  %v241 = vpop.f32.mrb[0].mxu0
  %v242 = vadd.f32 %v55, %v241
  %v243 = vpop.f32.mrb[0].mxu0
  %244 = vmatprep.mubr.f32.mxu0 0.0
  %245 = vmatmul.mubr.f32.gmra.mrb[0].mxu0 %v101
  %v246 = vpop.f32.mrb[0].mxu0
  %v247 = vadd.f32 %v55, %v246
  %v248 = vpop.f32.mrb[0].mxu0
  %249 = vmatprep.mubr.f32.mxu0 0.0
  %250 = vmatmul.mubr.f32.gmra.mrb[0].mxu0 %v104
  %v251 = vpop.f32.mrb[0].mxu0
  %v252 = vadd.f32 %v55, %v251
  %v253 = vpop.f32.mrb[0].mxu0
  %254 = vdwg.mxu0
  %v255 = vmax.f32 %v177, 0.0
  %v256 = vmax.f32 %v182, 0.0
  %v257 = vmax.f32 %v187, 0.0
  %v258 = vmax.f32 %v192, 0.0
  %v259 = vmax.f32 %v197, 0.0
  %v260 = vmax.f32 %v202, 0.0
  %v261 = vmax.f32 %v207, 0.0
  %v262 = vmax.f32 %v212, 0.0
  %v263 = vmax.f32 %v217, 0.0
  %v264 = vmax.f32 %v222, 0.0
  %v265 = vmax.f32 %v227, 0.0
  %v266 = vmax.f32 %v232, 0.0
  %v267 = vmax.f32 %v237, 0.0
  %v268 = vmax.f32 %v242, 0.0
  %v269 = vmax.f32 %v247, 0.0
  %v270 = vmax.f32 %v252, 0.0
  %v271 = vld [vmem:[%s3] sm:$0xff]
  %v272 = vld [vmem:[%s3 + $0x8] sm:$0xff]
  %v273 = vld [vmem:[%s3 + $0x10] sm:$0xff]
  %v274 = vld [vmem:[%s3 + $0x18] sm:$0xff]
  %v275 = vld [vmem:[%s3 + $0x20] sm:$0xff]
  %v276 = vld [vmem:[%s3 + $0x28] sm:$0xff]
  %v277 = vld [vmem:[%s3 + $0x30] sm:$0xff]
  %v278 = vld [vmem:[%s3 + $0x38] sm:$0xff]
  %v279 = vld [vmem:[%s3 + $0x40] sm:$0xff]
  %v280 = vld [vmem:[%s3 + $0x48] sm:$0xff]
  %v281 = vld [vmem:[%s3 + $0x50] sm:$0xff]
  %v282 = vld [vmem:[%s3 + $0x58] sm:$0xff]
  %v283 = vld [vmem:[%s3 + $0x60] sm:$0xff]
  %v284 = vld [vmem:[%s3 + $0x68] sm:$0xff]
  %v285 = vld [vmem:[%s3 + $0x70] sm:$0xff]
  %v286 = vld [vmem:[%s3 + $0x78] sm:$0xff]
  %v287 = vld [vmem:[%s4] sm:$0x1]
  %v289 = vlaneseq
  %v290 = vshrl.u32 %v289, 7
  %v291 = vsub.s32 0, %v290
  %v292 = vrot.slane %v287, %v291
  %294 = vmatprep.subr.mxu0 0.0
  %295 = vmatpush1.msra.mxu0 %v271
  %296 = vmatprep.subr.mxu0 0.0
  %297 = vmatpush1.msra.mxu0 %v272
  %298 = vmatprep.subr.mxu0 0.0
  %299 = vmatpush1.msra.mxu0 %v273
  %300 = vmatprep.subr.mxu0 0.0
  %301 = vmatpush1.msra.mxu0 %v274
  %302 = vmatprep.subr.mxu0 0.0
  %303 = vmatpush1.msra.mxu0 %v275
  %304 = vmatprep.subr.mxu0 0.0
  %305 = vmatpush1.msra.mxu0 %v276
  %306 = vmatprep.subr.mxu0 0.0
  %307 = vmatpush1.msra.mxu0 %v277
  %308 = vmatprep.subr.mxu0 0.0
  %309 = vmatpush1.msra.mxu0 %v278
  %310 = vmatprep.subr.mxu0 0.0
  %311 = vmatpush1.msra.mxu0 %v279
  %312 = vmatprep.subr.mxu0 0.0
  %313 = vmatpush1.msra.mxu0 %v280
  %314 = vmatprep.subr.mxu0 0.0
  %315 = vmatpush1.msra.mxu0 %v281
  %316 = vmatprep.subr.mxu0 0.0
  %317 = vmatpush1.msra.mxu0 %v282
  %318 = vmatprep.subr.mxu0 0.0
  %319 = vmatpush1.msra.mxu0 %v283
  %320 = vmatprep.subr.mxu0 0.0
  %321 = vmatpush1.msra.mxu0 %v284
  %322 = vmatprep.subr.mxu0 0.0
  %323 = vmatpush1.msra.mxu0 %v285
  %324 = vmatprep.subr.mxu0 0.0
  %325 = vmatpush1.msra.mxu0 %v286
  %326 = vmatprep.subr.mxu0 0.0
  %327 = vmatpush1.msra.mxu0 0.0
  %328 = vmatprep.subr.mxu0 0.0
  %329 = vmatpush1.msra.mxu0 0.0
  %330 = vmatprep.subr.mxu0 0.0
  %331 = vmatpush1.msra.mxu0 0.0
  %332 = vmatprep.subr.mxu0 0.0
  %333 = vmatpush1.msra.mxu0 0.0
  %334 = vmatprep.subr.mxu0 0.0
  %335 = vmatpush1.msra.mxu0 0.0
  %336 = vmatprep.subr.mxu0 0.0
  %337 = vmatpush1.msra.mxu0 0.0
  %338 = vmatprep.subr.mxu0 0.0
  %339 = vmatpush1.msra.mxu0 0.0
  %340 = vmatprep.subr.mxu0 0.0
  %341 = vmatpush1.msra.mxu0 0.0
  %342 = vmatprep.subr.mxu0 0.0
  %343 = vmatpush1.msra.mxu0 0.0
  %344 = vmatprep.subr.mxu0 0.0
  %345 = vmatpush1.msra.mxu0 0.0
  %346 = vmatprep.subr.mxu0 0.0
  %347 = vmatpush1.msra.mxu0 0.0
  %348 = vmatprep.subr.mxu0 0.0
  %349 = vmatpush1.msra.mxu0 0.0
  %350 = vmatprep.subr.mxu0 0.0
  %351 = vmatpush1.msra.mxu0 0.0
  %352 = vmatprep.subr.mxu0 0.0
  %353 = vmatpush1.msra.mxu0 0.0
  %354 = vmatprep.subr.mxu0 0.0
  %355 = vmatpush1.msra.mxu0 0.0
  %356 = vmatprep.subr.mxu0 0.0
  %357 = vmatpush1.msra.mxu0 0.0
  %358 = vmatprep.mubr.f32.mxu0 0.0
  %359 = vmatmul.mubr.f32.gmra.mrb[0].mxu0 %v255
  %v360 = vpop.f32.mrb[0].mxu0
  %v361 = vadd.f32 %v292, %v360
  %v362 = vpop.f32.mrb[0].mxu0
  %363 = vmatprep.mubr.f32.mxu0 0.0
  %364 = vmatmul.mubr.f32.gmra.mrb[0].mxu0 %v256
  %v365 = vpop.f32.mrb[0].mxu0
  %v366 = vadd.f32 %v292, %v365
  %v367 = vpop.f32.mrb[0].mxu0
  %368 = vmatprep.mubr.f32.mxu0 0.0
  %369 = vmatmul.mubr.f32.gmra.mrb[0].mxu0 %v257
  %v370 = vpop.f32.mrb[0].mxu0
  %v371 = vadd.f32 %v292, %v370
  %v372 = vpop.f32.mrb[0].mxu0
  %373 = vmatprep.mubr.f32.mxu0 0.0
  %374 = vmatmul.mubr.f32.gmra.mrb[0].mxu0 %v258
  %v375 = vpop.f32.mrb[0].mxu0
  %v376 = vadd.f32 %v292, %v375
  %v377 = vpop.f32.mrb[0].mxu0
  %378 = vmatprep.mubr.f32.mxu0 0.0
  %379 = vmatmul.mubr.f32.gmra.mrb[0].mxu0 %v259
  %v380 = vpop.f32.mrb[0].mxu0
  %v381 = vadd.f32 %v292, %v380
  %v382 = vpop.f32.mrb[0].mxu0
  %383 = vmatprep.mubr.f32.mxu0 0.0
  %384 = vmatmul.mubr.f32.gmra.mrb[0].mxu0 %v260
  %v385 = vpop.f32.mrb[0].mxu0
  %v386 = vadd.f32 %v292, %v385
  %v387 = vpop.f32.mrb[0].mxu0
  %388 = vmatprep.mubr.f32.mxu0 0.0
  %389 = vmatmul.mubr.f32.gmra.mrb[0].mxu0 %v261
  %v390 = vpop.f32.mrb[0].mxu0
  %v391 = vadd.f32 %v292, %v390
  %v392 = vpop.f32.mrb[0].mxu0
  %393 = vmatprep.mubr.f32.mxu0 0.0
  %394 = vmatmul.mubr.f32.gmra.mrb[0].mxu0 %v262
  %v395 = vpop.f32.mrb[0].mxu0
  %v396 = vadd.f32 %v292, %v395
  %v397 = vpop.f32.mrb[0].mxu0
  %398 = vmatprep.mubr.f32.mxu0 0.0
  %399 = vmatmul.mubr.f32.gmra.mrb[0].mxu0 %v263
  %v400 = vpop.f32.mrb[0].mxu0
  %v401 = vadd.f32 %v292, %v400
  %v402 = vpop.f32.mrb[0].mxu0
  %403 = vmatprep.mubr.f32.mxu0 0.0
  %404 = vmatmul.mubr.f32.gmra.mrb[0].mxu0 %v264
  %v405 = vpop.f32.mrb[0].mxu0
  %v406 = vadd.f32 %v292, %v405
  %v407 = vpop.f32.mrb[0].mxu0
  %408 = vmatprep.mubr.f32.mxu0 0.0
  %409 = vmatmul.mubr.f32.gmra.mrb[0].mxu0 %v265
  %v410 = vpop.f32.mrb[0].mxu0
  %v411 = vadd.f32 %v292, %v410
  %v412 = vpop.f32.mrb[0].mxu0
  %413 = vmatprep.mubr.f32.mxu0 0.0
  %414 = vmatmul.mubr.f32.gmra.mrb[0].mxu0 %v266
  %v415 = vpop.f32.mrb[0].mxu0
  %v416 = vadd.f32 %v292, %v415
  %v417 = vpop.f32.mrb[0].mxu0
  %418 = vmatprep.mubr.f32.mxu0 0.0
  %419 = vmatmul.mubr.f32.gmra.mrb[0].mxu0 %v267
  %v420 = vpop.f32.mrb[0].mxu0
  %v421 = vadd.f32 %v292, %v420
  %v422 = vpop.f32.mrb[0].mxu0
  %423 = vmatprep.mubr.f32.mxu0 0.0
  %424 = vmatmul.mubr.f32.gmra.mrb[0].mxu0 %v268
  %v425 = vpop.f32.mrb[0].mxu0
  %v426 = vadd.f32 %v292, %v425
  %v427 = vpop.f32.mrb[0].mxu0
  %428 = vmatprep.mubr.f32.mxu0 0.0
  %429 = vmatmul.mubr.f32.gmra.mrb[0].mxu0 %v269
  %v430 = vpop.f32.mrb[0].mxu0
  %v431 = vadd.f32 %v292, %v430
  %v432 = vpop.f32.mrb[0].mxu0
  %433 = vmatprep.mubr.f32.mxu0 0.0
  %434 = vmatmul.mubr.f32.gmra.mrb[0].mxu0 %v270
  %v435 = vpop.f32.mrb[0].mxu0
  %v436 = vadd.f32 %v292, %v435
  %v437 = vpop.f32.mrb[0].mxu0
  %438 = vdwg.mxu0
  %v439 = vmax.f32 %v361, 0.0
  %v440 = vmax.f32 %v366, 0.0
  %v441 = vmax.f32 %v371, 0.0
  %v442 = vmax.f32 %v376, 0.0
  %v443 = vmax.f32 %v381, 0.0
  %v444 = vmax.f32 %v386, 0.0
  %v445 = vmax.f32 %v391, 0.0
  %v446 = vmax.f32 %v396, 0.0
  %v447 = vmax.f32 %v401, 0.0
  %v448 = vmax.f32 %v406, 0.0
  %v449 = vmax.f32 %v411, 0.0
  %v450 = vmax.f32 %v416, 0.0
  %v451 = vmax.f32 %v421, 0.0
  %v452 = vmax.f32 %v426, 0.0
  %v453 = vmax.f32 %v431, 0.0
  %v454 = vmax.f32 %v436, 0.0
  %v455 = vld [vmem:[%s5] sm:$0xff]
  %v456 = vld [vmem:[%s5 + $0x8] sm:$0xff]
  %v457 = vld [vmem:[%s5 + $0x10] sm:$0xff]
  %v458 = vld [vmem:[%s5 + $0x18] sm:$0xff]
  %v459 = vld [vmem:[%s5 + $0x20] sm:$0xff]
  %v460 = vld [vmem:[%s5 + $0x28] sm:$0xff]
  %v461 = vld [vmem:[%s5 + $0x30] sm:$0xff]
  %v462 = vld [vmem:[%s5 + $0x38] sm:$0xff]
  %v463 = vld [vmem:[%s5 + $0x40] sm:$0xff]
  %v464 = vld [vmem:[%s5 + $0x48] sm:$0xff]
  %v465 = vld [vmem:[%s5 + $0x50] sm:$0xff]
  %v466 = vld [vmem:[%s5 + $0x58] sm:$0xff]
  %v467 = vld [vmem:[%s5 + $0x60] sm:$0xff]
  %v468 = vld [vmem:[%s5 + $0x68] sm:$0xff]
  %v469 = vld [vmem:[%s5 + $0x70] sm:$0xff]
  %v470 = vld [vmem:[%s5 + $0x78] sm:$0xff]
  %v471 = vld [vmem:[%s6] sm:$0x1]
  %v473 = vlaneseq
  %v474 = vshrl.u32 %v473, 7
  %v475 = vsub.s32 0, %v474
  %v476 = vrot.slane %v471, %v475
  %478 = vmatprep.subr.mxu0 0.0
  %479 = vmatpush1.msra.mxu0 %v455
  %480 = vmatprep.subr.mxu0 0.0
  %481 = vmatpush1.msra.mxu0 %v456
  %482 = vmatprep.subr.mxu0 0.0
  %483 = vmatpush1.msra.mxu0 %v457
  %484 = vmatprep.subr.mxu0 0.0
  %485 = vmatpush1.msra.mxu0 %v458
  %486 = vmatprep.subr.mxu0 0.0
  %487 = vmatpush1.msra.mxu0 %v459
  %488 = vmatprep.subr.mxu0 0.0
  %489 = vmatpush1.msra.mxu0 %v460
  %490 = vmatprep.subr.mxu0 0.0
  %491 = vmatpush1.msra.mxu0 %v461
  %492 = vmatprep.subr.mxu0 0.0
  %493 = vmatpush1.msra.mxu0 %v462
  %494 = vmatprep.subr.mxu0 0.0
  %495 = vmatpush1.msra.mxu0 %v463
  %496 = vmatprep.subr.mxu0 0.0
  %497 = vmatpush1.msra.mxu0 %v464
  %498 = vmatprep.subr.mxu0 0.0
  %499 = vmatpush1.msra.mxu0 %v465
  %500 = vmatprep.subr.mxu0 0.0
  %501 = vmatpush1.msra.mxu0 %v466
  %502 = vmatprep.subr.mxu0 0.0
  %503 = vmatpush1.msra.mxu0 %v467
  %504 = vmatprep.subr.mxu0 0.0
  %505 = vmatpush1.msra.mxu0 %v468
  %506 = vmatprep.subr.mxu0 0.0
  %507 = vmatpush1.msra.mxu0 %v469
  %508 = vmatprep.subr.mxu0 0.0
  %509 = vmatpush1.msra.mxu0 %v470
  %510 = vmatprep.subr.mxu0 0.0
  %511 = vmatpush1.msra.mxu0 0.0
  %512 = vmatprep.subr.mxu0 0.0
  %513 = vmatpush1.msra.mxu0 0.0
  %514 = vmatprep.subr.mxu0 0.0
  %515 = vmatpush1.msra.mxu0 0.0
  %516 = vmatprep.subr.mxu0 0.0
  %517 = vmatpush1.msra.mxu0 0.0
  %518 = vmatprep.subr.mxu0 0.0
  %519 = vmatpush1.msra.mxu0 0.0
  %520 = vmatprep.subr.mxu0 0.0
  %521 = vmatpush1.msra.mxu0 0.0
  %522 = vmatprep.subr.mxu0 0.0
  %523 = vmatpush1.msra.mxu0 0.0
  %524 = vmatprep.subr.mxu0 0.0
  %525 = vmatpush1.msra.mxu0 0.0
  %526 = vmatprep.subr.mxu0 0.0
  %527 = vmatpush1.msra.mxu0 0.0
  %528 = vmatprep.subr.mxu0 0.0
  %529 = vmatpush1.msra.mxu0 0.0
  %530 = vmatprep.subr.mxu0 0.0
  %531 = vmatpush1.msra.mxu0 0.0
  %532 = vmatprep.subr.mxu0 0.0
  %533 = vmatpush1.msra.mxu0 0.0
  %534 = vmatprep.subr.mxu0 0.0
  %535 = vmatpush1.msra.mxu0 0.0
  %536 = vmatprep.subr.mxu0 0.0
  %537 = vmatpush1.msra.mxu0 0.0
  %538 = vmatprep.subr.mxu0 0.0
  %539 = vmatpush1.msra.mxu0 0.0
  %540 = vmatprep.subr.mxu0 0.0
  %541 = vmatpush1.msra.mxu0 0.0
  %542 = vmatprep.mubr.f32.mxu0 0.0
  %543 = vmatmul.mubr.f32.gmra.mrb[0].mxu0 %v439
  %v544 = vpop.f32.mrb[0].mxu0
  %v545 = vadd.f32 %v476, %v544
  %v546 = vpop.f32.mrb[0].mxu0
  %547 = vmatprep.mubr.f32.mxu0 0.0
  %548 = vmatmul.mubr.f32.gmra.mrb[0].mxu0 %v440
  %v549 = vpop.f32.mrb[0].mxu0
  %v550 = vadd.f32 %v476, %v549
  %v551 = vpop.f32.mrb[0].mxu0
  %552 = vmatprep.mubr.f32.mxu0 0.0
  %553 = vmatmul.mubr.f32.gmra.mrb[0].mxu0 %v441
  %v554 = vpop.f32.mrb[0].mxu0
  %v555 = vadd.f32 %v476, %v554
  %v556 = vpop.f32.mrb[0].mxu0
  %557 = vmatprep.mubr.f32.mxu0 0.0
  %558 = vmatmul.mubr.f32.gmra.mrb[0].mxu0 %v442
  %v559 = vpop.f32.mrb[0].mxu0
  %v560 = vadd.f32 %v476, %v559
  %v561 = vpop.f32.mrb[0].mxu0
  %562 = vmatprep.mubr.f32.mxu0 0.0
  %563 = vmatmul.mubr.f32.gmra.mrb[0].mxu0 %v443
  %v564 = vpop.f32.mrb[0].mxu0
  %v565 = vadd.f32 %v476, %v564
  %v566 = vpop.f32.mrb[0].mxu0
  %567 = vmatprep.mubr.f32.mxu0 0.0
  %568 = vmatmul.mubr.f32.gmra.mrb[0].mxu0 %v444
  %v569 = vpop.f32.mrb[0].mxu0
  %v570 = vadd.f32 %v476, %v569
  %v571 = vpop.f32.mrb[0].mxu0
  %572 = vmatprep.mubr.f32.mxu0 0.0
  %573 = vmatmul.mubr.f32.gmra.mrb[0].mxu0 %v445
  %v574 = vpop.f32.mrb[0].mxu0
  %v575 = vadd.f32 %v476, %v574
  %v576 = vpop.f32.mrb[0].mxu0
  %577 = vmatprep.mubr.f32.mxu0 0.0
  %578 = vmatmul.mubr.f32.gmra.mrb[0].mxu0 %v446
  %v579 = vpop.f32.mrb[0].mxu0
  %v580 = vadd.f32 %v476, %v579
  %v581 = vpop.f32.mrb[0].mxu0
  %582 = vmatprep.mubr.f32.mxu0 0.0
  %583 = vmatmul.mubr.f32.gmra.mrb[0].mxu0 %v447
  %v584 = vpop.f32.mrb[0].mxu0
  %v585 = vadd.f32 %v476, %v584
  %v586 = vpop.f32.mrb[0].mxu0
  %587 = vmatprep.mubr.f32.mxu0 0.0
  %588 = vmatmul.mubr.f32.gmra.mrb[0].mxu0 %v448
  %v589 = vpop.f32.mrb[0].mxu0
  %v590 = vadd.f32 %v476, %v589
  %v591 = vpop.f32.mrb[0].mxu0
  %592 = vmatprep.mubr.f32.mxu0 0.0
  %593 = vmatmul.mubr.f32.gmra.mrb[0].mxu0 %v449
  %v594 = vpop.f32.mrb[0].mxu0
  %v595 = vadd.f32 %v476, %v594
  %v596 = vpop.f32.mrb[0].mxu0
  %597 = vmatprep.mubr.f32.mxu0 0.0
  %598 = vmatmul.mubr.f32.gmra.mrb[0].mxu0 %v450
  %v599 = vpop.f32.mrb[0].mxu0
  %v600 = vadd.f32 %v476, %v599
  %v601 = vpop.f32.mrb[0].mxu0
  %602 = vmatprep.mubr.f32.mxu0 0.0
  %603 = vmatmul.mubr.f32.gmra.mrb[0].mxu0 %v451
  %v604 = vpop.f32.mrb[0].mxu0
  %v605 = vadd.f32 %v476, %v604
  %v606 = vpop.f32.mrb[0].mxu0
  %607 = vmatprep.mubr.f32.mxu0 0.0
  %608 = vmatmul.mubr.f32.gmra.mrb[0].mxu0 %v452
  %v609 = vpop.f32.mrb[0].mxu0
  %v610 = vadd.f32 %v476, %v609
  %v611 = vpop.f32.mrb[0].mxu0
  %612 = vmatprep.mubr.f32.mxu0 0.0
  %613 = vmatmul.mubr.f32.gmra.mrb[0].mxu0 %v453
  %v614 = vpop.f32.mrb[0].mxu0
  %v615 = vadd.f32 %v476, %v614
  %v616 = vpop.f32.mrb[0].mxu0
  %617 = vmatprep.mubr.f32.mxu0 0.0
  %618 = vmatmul.mubr.f32.gmra.mrb[0].mxu0 %v454
  %v619 = vpop.f32.mrb[0].mxu0
  %v620 = vadd.f32 %v476, %v619
  %v621 = vpop.f32.mrb[0].mxu0
  %622 = vdwg.mxu0
  %v623 = vmax.f32 %v545, 0.0
  %v624 = vmax.f32 %v550, 0.0
  %v625 = vmax.f32 %v555, 0.0
  %v626 = vmax.f32 %v560, 0.0
  %v627 = vmax.f32 %v565, 0.0
  %v628 = vmax.f32 %v570, 0.0
  %v629 = vmax.f32 %v575, 0.0
  %v630 = vmax.f32 %v580, 0.0
  %v631 = vmax.f32 %v585, 0.0
  %v632 = vmax.f32 %v590, 0.0
  %v633 = vmax.f32 %v595, 0.0
  %v634 = vmax.f32 %v600, 0.0
  %v635 = vmax.f32 %v605, 0.0
  %v636 = vmax.f32 %v610, 0.0
  %v637 = vmax.f32 %v615, 0.0
  %v638 = vmax.f32 %v620, 0.0
  %v639 = vld [vmem:[%s7] sm:$0xff]
  %v640 = vld [vmem:[%s8] sm:$0xff]
  %642 = vset.pattern.permute.xlu0 0
  %643 = vperm.xlu0 %642, %v640
  %v644 = vpop.permute.xlu0 %643
  %646 = vmatprep.subr.mxu0 0.0
  %647 = vmatpush1.xpose.msra.mxu0 %v623
  %648 = vmatprep.subr.mxu0 0.0
  %649 = vmatpush1.xpose.msra.mxu0 %v624
  %650 = vmatprep.subr.mxu0 0.0
  %651 = vmatpush1.xpose.msra.mxu0 %v625
  %652 = vmatprep.subr.mxu0 0.0
  %653 = vmatpush1.xpose.msra.mxu0 %v626
  %654 = vmatprep.subr.mxu0 0.0
  %655 = vmatpush1.xpose.msra.mxu0 %v627
  %656 = vmatprep.subr.mxu0 0.0
  %657 = vmatpush1.xpose.msra.mxu0 %v628
  %658 = vmatprep.subr.mxu0 0.0
  %659 = vmatpush1.xpose.msra.mxu0 %v629
  %660 = vmatprep.subr.mxu0 0.0
  %661 = vmatpush1.xpose.msra.mxu0 %v630
  %662 = vmatprep.subr.mxu0 0.0
  %663 = vmatpush1.xpose.msra.mxu0 %v631
  %664 = vmatprep.subr.mxu0 0.0
  %665 = vmatpush1.xpose.msra.mxu0 %v632
  %666 = vmatprep.subr.mxu0 0.0
  %667 = vmatpush1.xpose.msra.mxu0 %v633
  %668 = vmatprep.subr.mxu0 0.0
  %669 = vmatpush1.xpose.msra.mxu0 %v634
  %670 = vmatprep.subr.mxu0 0.0
  %671 = vmatpush1.xpose.msra.mxu0 %v635
  %672 = vmatprep.subr.mxu0 0.0
  %673 = vmatpush1.xpose.msra.mxu0 %v636
  %674 = vmatprep.subr.mxu0 0.0
  %675 = vmatpush1.xpose.msra.mxu0 %v637
  %676 = vmatprep.subr.mxu0 0.0
  %677 = vmatpush1.xpose.msra.mxu0 %v638
  %678 = vmatprep.subr.mxu0 0.0
  %679 = vmatpush1.xpose.msra.mxu0 0.0
  %680 = vmatprep.subr.mxu0 0.0
  %681 = vmatpush1.xpose.msra.mxu0 0.0
  %682 = vmatprep.subr.mxu0 0.0
  %683 = vmatpush1.xpose.msra.mxu0 0.0
  %684 = vmatprep.subr.mxu0 0.0
  %685 = vmatpush1.xpose.msra.mxu0 0.0
  %686 = vmatprep.subr.mxu0 0.0
  %687 = vmatpush1.xpose.msra.mxu0 0.0
  %688 = vmatprep.subr.mxu0 0.0
  %689 = vmatpush1.xpose.msra.mxu0 0.0
  %690 = vmatprep.subr.mxu0 0.0
  %691 = vmatpush1.xpose.msra.mxu0 0.0
  %692 = vmatprep.subr.mxu0 0.0
  %693 = vmatpush1.xpose.msra.mxu0 0.0
  %694 = vmatprep.subr.mxu0 0.0
  %695 = vmatpush1.xpose.msra.mxu0 0.0
  %696 = vmatprep.subr.mxu0 0.0
  %697 = vmatpush1.xpose.msra.mxu0 0.0
  %698 = vmatprep.subr.mxu0 0.0
  %699 = vmatpush1.xpose.msra.mxu0 0.0
  %700 = vmatprep.subr.mxu0 0.0
  %701 = vmatpush1.xpose.msra.mxu0 0.0
  %702 = vmatprep.subr.mxu0 0.0
  %703 = vmatpush1.xpose.msra.mxu0 0.0
  %704 = vmatprep.subr.mxu0 0.0
  %705 = vmatpush1.xpose.msra.mxu0 0.0
  %706 = vmatprep.subr.mxu0 0.0
  %707 = vmatpush1.xpose.msra.mxu0 0.0
  %708 = vmatprep.subr.mxu0 0.0
  %709 = vmatpush1.xpose.msra.mxu0 0.0
  %710 = vmatprep.mubr.f32.mxu0 0.0
  %711 = vmatmul.mubr.f32.gmra.mrb[0].mxu0 %v639
  %v712 = vpop.f32.mrb[0].mxu0
  %v713 = vadd.f32 %v644, %v712
  %v714 = vpop.f32.mrb[0].mxu0
  %715 = vdwg.mxu0
  %v716 = vmax.f32 %v713, -5.0
  %v717 = vmin.f32 %v716, 5.0
  %v718 = vmax.f32 %v713, 0.0
  %vm719 = vcmp.ne.f32.partialorder %v713, %v713
  %v720 = vadd.f32 %v713, 0.0
  %v721 = vand.u32 2147483647, %v713
  %v722 = vsub.f32 0.0, %v721
  %v723 = vmul.f32 %v722, 1.442695
  %v724 = vpow.pop %v723
  %v725 = vadd.f32 %v724, 1.0
  %v726 = vlog2.pop %v725
  %v727 = vmul.f32 %v726, 0.6931472
  %v728 = vmul.f32 -0.5, %v724
  %v729 = vadd.f32 %v728, 1.0
  %v730 = vmul.f32 %v729, %v724
  %v731 = vand.u32 2147483647, %v724
  %vm732 = vcmp.lt.f32.partialorder %v731, 0.0004427343
  %v733 = vsel %vm732, %v730, %v727
  %v734 = vadd.f32 %v718, %v733
  %v735 = vsel %vm719, %v720, %v734
  %v736 = vmul.f32 %v735, 0.9
  %v737 = vadd.f32 %v736, 0.1
  %v738 = vlaneseq
  %v739 = vshrl.u32 %v738, 7
  %vm740 = vcmp.eq.s32.totalorder %v739, 0
  %v741 = vsel %vm740, %v717, %v737
  %742 = vst [vmem:[%s9] sm:$0x3] %v741
  // Predicated region
  $region38: #{decoder_forward.1} parent=0 // pred_check
    _
  $region39: #{decoder_forward.1} parent=0 // pred_check_branch
    %744 = sbr.rel (0) target = $region41
  $region40: #{decoder_forward.1} parent=0 // pred_region
    _
  $region41: #{decoder_forward.1} parent=0 // pred_fallthru
    _
  // Predicated region
  $region42: #{decoder_forward.1} parent=0 // pred_check
    _
  $region43: #{decoder_forward.1} parent=0 // pred_check_branch
    %746 = sbr.rel (0) target = $region45
  $region44: #{decoder_forward.1} parent=0 // pred_region
    _
  $region45: #{decoder_forward.1} parent=0 // pred_fallthru
    _

</llo_original>
